<compile_context>
chip_gen: v7x
topology: tpu7x:2x2x1
jax: 0.10.0
libtpu: 0.0.40
codegen_flags: <defaults>
</compile_context>

<pallas_src>
import jax
import jax.numpy as jnp
from jax.experimental import pallas as pl
from jax.experimental.pallas import tpu as pltpu

_LANES = 128
# (4096, 128) f32 block = 2 MiB; x4 for double-buffered in+out = 8 MiB VMEM.
_MAX_TILE_M = 4096


def _logistic_kernel(x_ref, w_ref, b_ref, o_ref):
    # x_ref: (tile_m, 128) VMEM block; w_ref / b_ref: (1, 1) SMEM scalars.
    w = w_ref[0, 0]
    b = b_ref[0, 0]
    z = x_ref[...] * w + b                       # Linear(1, 1) == x * w + b
    # sigmoid(z) = 0.5 * (tanh(z / 2) + 1): single EUP transcendental per vreg.
    o_ref[...] = 0.5 * (jnp.tanh(0.5 * z) + 1.0)


def logistic_regression_forward(x, weight, bias):
    """x: (N, 1) f32, weight: (1, 1) f32, bias: (1,) f32 -> (N, 1) f32."""
    n = x.shape[0]
    dtype = x.dtype

    # Lane-dense repacking: view the N scalars as a (rows, 128) slab so every
    # (8,128) vreg tile is fully used and stores are unmasked vst.
    rows = max(1, pl.cdiv(n, _LANES))
    rows = ((rows + 7) // 8) * 8                 # sublane (8) alignment only
    total = rows * _LANES
    tile_m = min(_MAX_TILE_M, rows)              # rows is already a multiple of 8

    x_flat = x.reshape(-1)
    if total != n:                               # static check: skip pad when exact
        x_flat = jnp.pad(x_flat, (0, total - n))
    x2d = x_flat.reshape(rows, _LANES)

    w_s = weight.reshape(1, 1).astype(dtype)
    b_s = bias.reshape(1, 1).astype(dtype)

    # Ragged last block (rows % tile_m != 0) is masked by Pallas — no
    # tile-multiple padding, no dead HBM traffic.
    grid = (pl.cdiv(rows, tile_m),)

    out2d = pl.pallas_call(
        _logistic_kernel,
        out_shape=jax.ShapeDtypeStruct((rows, _LANES), dtype),
        grid=grid,
        in_specs=[
            pl.BlockSpec((tile_m, _LANES), lambda i: (i, 0)),
            pl.BlockSpec(memory_space=pltpu.MemorySpace.SMEM),
            pl.BlockSpec(memory_space=pltpu.MemorySpace.SMEM),
        ],
        out_specs=pl.BlockSpec((tile_m, _LANES), lambda i: (i, 0)),
        compiler_params=pltpu.CompilerParams(
            dimension_semantics=("parallel",),   # shard the row grid across TCs
        ),
        cost_estimate=pl.CostEstimate(
            flops=2 * total,                     # mul + add per element
            transcendentals=total,               # one tanh per element
            bytes_accessed=2 * 4 * total,        # read x + write y (f32)
        ),
    )(x2d, w_s, b_s)

    # Restore the (N, 1) contract; skip the slice when no padding was added.
    if total == n:
        return out2d.reshape(n, 1)
    return out2d.reshape(-1)[:n].reshape(n, 1)


def _reference(x, weight, bias):
    return jax.nn.sigmoid(x @ weight.T + bias)


if __name__ == "__main__":
    key = jax.random.PRNGKey(0)
    k_x, k_w, k_b, k_x2 = jax.random.split(key, 4)

    # PyTorch Linear(1, 1) init: U(-1/sqrt(in_features), 1/sqrt(in_features)) = U(-1, 1)
    weight = jax.random.uniform(k_w, (1, 1), jnp.float32, minval=-1.0, maxval=1.0)
    bias = jax.random.uniform(k_b, (1,), jnp.float32, minval=-1.0, maxval=1.0)

    # Small batch of scalar features, shape (N, 1)
    x = jax.random.normal(k_x, (8, 1), jnp.float32)
    y = jax.block_until_ready(logistic_regression_forward(x, weight, bias))
    y_ref = _reference(x, weight, bias)
    assert y.shape == (8, 1)
    assert jnp.allclose(y, y_ref, atol=1e-5, rtol=1e-5), "mismatch vs reference (N=8)"

    # Second check: N not a multiple of 128 exercises the pad/slice path.
    x2 = jax.random.normal(k_x2, (300, 1), jnp.float32)
    y2 = jax.block_until_ready(logistic_regression_forward(x2, weight, bias))
    y2_ref = _reference(x2, weight, bias)
    assert y2.shape == (300, 1)
    assert jnp.allclose(y2, y2_ref, atol=1e-5, rtol=1e-5), "mismatch vs reference (N=300)"

    print("KERNEL_OK")
</pallas_src>

<mosaic_0001>
module attributes {stable_mosaic.version = 11 : i64} {
  func.func @_logistic_kernel(%arg0: i32, %arg1: memref<8x128xf32, #tpu.memory_space<vmem>>, %arg2: memref<1x1xf32, #tpu.memory_space<smem>>, %arg3: memref<1x1xf32, #tpu.memory_space<smem>>, %arg4: memref<8x128xf32, #tpu.memory_space<vmem>>) attributes {dimension_semantics = [#tpu.dimension_semantics<parallel>], iteration_bounds = array<i64: 1>, scalar_prefetch = 0 : i64, scratch_operands = 0 : i64, tpu.core_type = #tpu.core_type<tc>, window_params = [{transform_indices = @transform_0, window_bounds = array<i64: 8, 128>}, {transform_indices = @transform_1, window_bounds = array<i64: 1, 1>}, {transform_indices = @transform_2, window_bounds = array<i64: 1, 1>}, {transform_indices = @transform_3, window_bounds = array<i64: 8, 128>}]} {
    %c0 = arith.constant 0 : index
    %c0_0 = arith.constant 0 : index
    %0 = memref.load %arg2[%c0, %c0_0] : memref<1x1xf32, #tpu.memory_space<smem>>
    %c0_1 = arith.constant 0 : index
    %c0_2 = arith.constant 0 : index
    %1 = memref.load %arg3[%c0_1, %c0_2] : memref<1x1xf32, #tpu.memory_space<smem>>
    %c0_3 = arith.constant 0 : index
    %c0_4 = arith.constant 0 : index
    %2 = vector.load %arg1[%c0_3, %c0_4] : memref<8x128xf32, #tpu.memory_space<vmem>>, vector<8x128xf32>
    %3 = vector.broadcast %0 : f32 to vector<8x128xf32>
    %4 = arith.mulf %2, %3 : vector<8x128xf32>
    %5 = vector.broadcast %1 : f32 to vector<8x128xf32>
    %6 = arith.addf %4, %5 : vector<8x128xf32>
    %cst = arith.constant 5.000000e-01 : f32
    %7 = vector.broadcast %cst : f32 to vector<8x128xf32>
    %8 = arith.mulf %7, %6 : vector<8x128xf32>
    %9 = math.tanh %8 : vector<8x128xf32>
    %cst_5 = arith.constant 1.000000e+00 : f32
    %10 = vector.broadcast %cst_5 : f32 to vector<8x128xf32>
    %11 = arith.addf %9, %10 : vector<8x128xf32>
    %cst_6 = arith.constant 5.000000e-01 : f32
    %12 = vector.broadcast %cst_6 : f32 to vector<8x128xf32>
    %13 = arith.mulf %12, %11 : vector<8x128xf32>
    %c0_7 = arith.constant 0 : index
    %c0_8 = arith.constant 0 : index
    %14 = vector.load %arg4[%c0_7, %c0_8] : memref<8x128xf32, #tpu.memory_space<vmem>>, vector<8x128xf32>
    tpu.vector_store %arg4[%c0_7, %c0_8], %13 {strides = array<i32>} : memref<8x128xf32, #tpu.memory_space<vmem>>, vector<8x128xf32>,
    return
  }
  func.func @transform_0(%arg0: i32) -> (i32, i32) {
    %c0_i32 = arith.constant 0 : i32
    %c0_i32_0 = arith.constant 0 : i32
    return %arg0, %c0_i32 : i32, i32
  }
  func.func @transform_1(%arg0: i32) -> (i32, i32) {
    %c0_i32 = arith.constant 0 : i32
    %c0_i32_0 = arith.constant 0 : i32
    %c0_i32_1 = arith.constant 0 : i32
    return %c0_i32, %c0_i32_0 : i32, i32
  }
  func.func @transform_2(%arg0: i32) -> (i32, i32) {
    %c0_i32 = arith.constant 0 : i32
    %c0_i32_0 = arith.constant 0 : i32
    %c0_i32_1 = arith.constant 0 : i32
    return %c0_i32, %c0_i32_0 : i32, i32
  }
  func.func @transform_3(%arg0: i32) -> (i32, i32) {
    %c0_i32 = arith.constant 0 : i32
    %c0_i32_0 = arith.constant 0 : i32
    return %arg0, %c0_i32 : i32, i32
  }
}

</mosaic_0001>

<llo_original>
// kernel: tpu_custom_call.1
$region0: #{tpu_custom_call.1}
  #allocation0 [shape = 'u32[]', space=smem, size = 0x4, offset = 0x4, fixed_abs, tag = 'smem constant byte address 0x4 - core index']
  #allocation1 [shape = 'u32[144,128]{1,0:T(1,128)}', space=vmem, size = 0x12000, scoped, tag = 'internal scratch']
  #allocation2 [shape = 'f32[1,1]{1,0:T(1,128)S(6)}', space=smem, size = 0x200, scoped, tag = 'scoped memory for tpu_custom_call.1']
  #allocation3 [shape = 'f32[1,1]{1,0:T(1,128)S(6)}', space=smem, size = 0x200, scoped, tag = 'scoped memory for tpu_custom_call.1']
  %s0 = inlined_call_operand.hbm [shape: f32[8,128], index: 0, kind: input, shape index: {}]
  %s1 = inlined_call_operand.<no memory space> [shape: f32[1,1], index: 1, kind: input, shape index: {}]
  %s2 = inlined_call_operand.<no memory space> [shape: f32[1,1], index: 2, kind: input, shape index: {}]
  %s3 = inlined_call_operand.hbm [shape: f32[8,128], index: 3, kind: output, shape index: {}]
  %s4 = sld [smem:[#allocation0]]
  $region26: #{tpu_custom_call.1} parent=0
    _
  %s6 = ssub.s32 1, %s4
  %s7 = scalar_select 0, %s6, %s4
  %8 = sst [smem:[#allocation2]] %s1
  %9 = sst [smem:[#allocation3]] %s2
  $region1: #{tpu_custom_call.1} parent=0
    #allocation4 [shape = 'u8[4096]{0}', space=vmem, size = 0x1000, scoped, tag = 'input window, operand 0, single buffered']
    #allocation5 [shape = 's32[1]{0}', space=sflag, size = 0x4, scoped, tag = 'scoped memory for tpu_custom_call.1']
    #allocation6 [shape = 's32[1]{0}', space=sflag, size = 0x4, scoped, tag = 'scoped memory for tpu_custom_call.1']
    #allocation7 [shape = 'u8[4096]{0}', space=vmem, size = 0x1000, scoped, tag = 'output window, operand 0, single buffered']
    %10 = vsyncpa [#allocation5], 0
    %11 = vsyncpa [#allocation6], 0
    // Predicated region
    $region2: #{tpu_custom_call.1} parent=1 // pred_check
      _
    $region3: #{tpu_custom_call.1} parent=1 // pred_check_branch
      %13 = sbr.rel (0) target = $region5
    $region4: #{tpu_custom_call.1} parent=1 // pred_region
      %s15 = ssub.s32 128, 128
      %16 = vsyncadd [#allocation5], %s15
      %s18 = sshll.u32 [#allocation4], 4
      %s19 = int_to_ptr.vmem [resolvable:$true] %s18
      %21 = dma.hbm_to_vmem [thread:$0]  %s0, 128, %s19, [#allocation5]
    $region5: #{tpu_custom_call.1} parent=1 // pred_fallthru
      _
    // Predicated region
    $region6: #{tpu_custom_call.1} parent=1 // pred_check
      _
    $region7: #{tpu_custom_call.1} parent=1 // pred_check_branch
      %23 = sbr.rel (0) target = $region9
    $region8: #{tpu_custom_call.1} parent=1 // pred_region
      _
    $region9: #{tpu_custom_call.1} parent=1 // pred_fallthru
      _
    // Predicated region
    $region10: #{tpu_custom_call.1} parent=1 // pred_check
      _
    $region11: #{tpu_custom_call.1} parent=1 // pred_check_branch
      %25 = sbr.rel (0) target = $region13
    $region12: #{tpu_custom_call.1} parent=1 // pred_region
      _
    $region13: #{tpu_custom_call.1} parent=1 // pred_fallthru
      _
    // Predicated region
    $region14: #{tpu_custom_call.1} parent=1 // pred_check
      _
    $region15: #{tpu_custom_call.1} parent=1 // pred_check_branch
      %27 = sbr.rel (0) target = $region17
    $region16: #{tpu_custom_call.1} parent=1 // pred_region
      %28 = dma.done [#allocation5], 128
    $region17: #{tpu_custom_call.1} parent=1 // pred_fallthru
      _
    %s29 = sld [smem:[#allocation2]]
    %s30 = sld [smem:[#allocation3]]
    %v31 = vld [vmem:[#allocation4] sm:$0xff]
    %v32 = vstv %s29
    %v33 = vmul.f32 %v31, %v32
    %v34 = vstv %s30
    %v35 = vadd.f32 %v33, %v34
    %v36 = vmul.f32 %v35, 0.5
    %v37 = vtanh.pop %v36
    %v38 = vadd.f32 %v37, 1.0
    %v39 = vmul.f32 %v38, 0.5
    %40 = vst [vmem:[#allocation7] sm:$0xff] %v39
    // Predicated region
    $region18: #{tpu_custom_call.1} parent=1 // pred_check
      _
    $region19: #{tpu_custom_call.1} parent=1 // pred_check_branch
      %42 = sbr.rel (0) target = $region21
    $region20: #{tpu_custom_call.1} parent=1 // pred_region
      %s44 = ssub.s32 128, 128
      %45 = vsyncadd [#allocation6], %s44
      %s47 = sshll.u32 [#allocation7], 4
      %s48 = int_to_ptr.vmem [resolvable:$true] %s47
      %50 = dma.vmem_to_hbm [thread:$0]  %s48, 128, %s3, [#allocation6]
    $region21: #{tpu_custom_call.1} parent=1 // pred_fallthru
      _
    // Predicated region
    $region22: #{tpu_custom_call.1} parent=1 // pred_check
      _
    $region23: #{tpu_custom_call.1} parent=1 // pred_check_branch
      %52 = sbr.rel (0) target = $region25
    $region24: #{tpu_custom_call.1} parent=1 // pred_region
      %53 = dma.done [#allocation6], 128
    $region25: #{tpu_custom_call.1} parent=1 // pred_fallthru
      _
    %54 = vsyncpa [#allocation5], 1
    %55 = vsyncpa [#allocation6], 1

</llo_original>
